<compile_context>
chip_gen: v7x
topology: tpu7x:2x2x1
jax: 0.10.0
libtpu: 0.0.40
codegen_flags: <defaults>
</compile_context>

<pallas_src>
import jax
import jax.numpy as jnp
from jax.experimental import pallas as pl
from jax.experimental.pallas import tpu as pltpu

SMOOTH = 1e-5
LANES = 128


def _make_kernel(n_classes, do_softmax, mask_pad):
    """Build the dice-partial-sums kernel.

    Grid = (chunk, spatial_tile).
      x_ref : VMEM (B, C, RT, 128)  scores, native dtype
      t_ref : VMEM (B, RT, 128)     int8/int32 labels (-1 = padding / ignore)
      i_ref : VMEM (1, C, 8, 128)   running sum of score * one_hot   (intersect)
      y_ref : VMEM (1, C, 8, 128)   running sum of one_hot           (y_sum)
      z_ref : VMEM (1, C, 8, 128)   running sum of score * score     (z_sum)
    Outputs are block-resident accumulators over the spatial axis (init at s==0).
    """

    def kernel(x_ref, t_ref, i_ref, y_ref, z_ref):
        s = pl.program_id(1)

        @pl.when(s == 0)
        def _init():
            i_ref[...] = jnp.zeros_like(i_ref)
            y_ref[...] = jnp.zeros_like(y_ref)
            z_ref[...] = jnp.zeros_like(z_ref)

        t = t_ref[...].astype(jnp.int32)                     # (B, RT, 128)
        B, RT, _ = t.shape
        n_sub = (B * RT) // 8                                # RT is a multiple of 32

        if do_softmax:
            # Fused softmax over the class axis (reads scores exactly once).
            x = x_ref[...].astype(jnp.float32)               # (B, C, RT, 128)
            x_max = jnp.max(x, axis=1, keepdims=True)
            ex = jnp.exp(x - x_max)
            x = ex / jnp.sum(ex, axis=1, keepdims=True)
            if mask_pad:
                # Padded pixels carry label -1; zero their (uniform) softmax so
                # they contribute nothing to z_sum.
                x = jnp.where((t >= 0)[:, None, :, :], x, 0.0)

        for c in range(n_classes):
            if do_softmax:
                score = x[:, c]                              # (B, RT, 128) f32
            else:
                score = x_ref[:, c].astype(jnp.float32)      # (B, RT, 128) f32
            m = (t == c).astype(jnp.float32)                 # one-hot, reused twice

            # Vreg-granular partial sums: reduce only the leading axis so the
            # accumulation is plain vadds into full (8,128) tiles.
            i_part = jnp.sum((score * m).reshape(n_sub, 8, LANES), axis=0)
            y_part = jnp.sum(m.reshape(n_sub, 8, LANES), axis=0)
            z_part = jnp.sum((score * score).reshape(n_sub, 8, LANES), axis=0)

            i_ref[0, c] += i_part
            y_ref[0, c] += y_part
            z_ref[0, c] += z_part

    return kernel


def mutil_dice_loss(inputs, target, n_classes, weight=None, softmax=False):
    """JAX/Pallas equivalent of Mutil_DiceLoss.forward (NCHW scores, int labels)."""
    B, C, H, W = inputs.shape
    assert C == n_classes, f"inputs channels {C} != n_classes {n_classes}"
    assert target.shape == (B, H, W)

    if weight is None:
        weight = jnp.ones((n_classes,), jnp.float32)
    else:
        weight = jnp.asarray(weight, jnp.float32)

    hw = H * W
    rows = (hw + LANES - 1) // LANES                         # 128-lane rows

    score_dtype = inputs.dtype
    itemsize = jnp.dtype(score_dtype).itemsize
    if n_classes <= 127:
        lbl_dtype = jnp.int8
        # Clip first so labels outside [0, n_classes) (e.g. ignore=255, or any
        # value >= 128) stay outside every class id after the int8 cast.
        t_small = jnp.clip(target, -1, 127).astype(lbl_dtype)
    else:
        lbl_dtype = jnp.int32
        t_small = target.astype(lbl_dtype)
    lbl_itemsize = jnp.dtype(lbl_dtype).itemsize

    # ---- tiling: big blocks, 32-row aligned, ~32 MiB streaming budget ----------
    per_row = B * LANES * (2 * C * itemsize + 2 * lbl_itemsize)      # double-buffered ins
    if softmax:
        per_row += 2 * B * LANES * C * 4                             # in-kernel f32 temps
    BUDGET = 32 * 1024 * 1024
    max_rows = max(32, (BUDGET // per_row) // 32 * 32)

    rows32 = ((rows + 31) // 32) * 32
    n_chunks = 2 if rows32 >= 64 else 1                      # feed both v7x TensorCores
    chunk_rows = (((rows32 + n_chunks - 1) // n_chunks + 31) // 32) * 32
    steps = (chunk_rows + max_rows - 1) // max_rows
    row_tile = (((chunk_rows + steps - 1) // steps + 31) // 32) * 32
    chunk_rows = steps * row_tile
    rows_pad = n_chunks * chunk_rows
    hw_pad = rows_pad * LANES
    pad = hw_pad - hw

    x = inputs.reshape(B, C, hw)                             # native dtype, free reshape
    t = t_small.reshape(B, hw)
    if pad:
        # Padded scores are 0 and padded labels are -1 -> contribute nothing.
        # TODO(synk): mask the ragged tail in-kernel instead of this HBM pad copy.
        x = jnp.pad(x, ((0, 0), (0, 0), (0, pad)))
        t = jnp.pad(t, ((0, 0), (0, pad)), constant_values=-1)
    x = x.reshape(B, C, rows_pad, LANES)
    t = t.reshape(B, rows_pad, LANES)

    # ---- explicit VMEM budget (double-buffered inputs + temps + outputs) -------
    score_blk = B * C * row_tile * LANES * itemsize
    label_blk = B * row_tile * LANES * lbl_itemsize
    temps = (2 * B * C * row_tile * LANES * 4) if softmax else (2 * B * row_tile * LANES * 4)
    out_blk = 3 * C * 8 * LANES * 4
    est = 2 * (score_blk + label_blk) + temps + 2 * out_blk
    vmem_limit = int(min(max(est + (8 << 20), 16 << 20), 48 << 20))

    kernel = _make_kernel(n_classes, softmax, pad > 0)
    out_sds = jax.ShapeDtypeStruct((n_chunks, C, 8, LANES), jnp.float32)
    acc_spec = pl.BlockSpec((1, C, 8, LANES), lambda ch, s: (ch, 0, 0, 0))

    i_out, y_out, z_out = pl.pallas_call(
        kernel,
        out_shape=(out_sds, out_sds, out_sds),
        grid_spec=pltpu.PrefetchScalarGridSpec(
            num_scalar_prefetch=0,
            grid=(n_chunks, steps),
            in_specs=[
                # scores: all classes in one block (enables fused softmax),
                # spatial tile picked by the DMA, no transpose needed
                pl.BlockSpec((B, C, row_tile, LANES),
                             lambda ch, s: (0, 0, ch * steps + s, 0)),
                # labels: streamed exactly once over the whole grid
                pl.BlockSpec((B, row_tile, LANES),
                             lambda ch, s: (0, ch * steps + s, 0)),
            ],
            out_specs=(acc_spec, acc_spec, acc_spec),
        ),
        compiler_params=pltpu.CompilerParams(
            dimension_semantics=("parallel", "arbitrary"),
            vmem_limit_bytes=vmem_limit,
        ),
    )(x, t)

    # Finalize in the wrapper: combine chunks / sublanes / lanes, dice, weights.
    intersect = jnp.sum(i_out, axis=(0, 2, 3))               # (C,)
    y_sum = jnp.sum(y_out, axis=(0, 2, 3))
    z_sum = jnp.sum(z_out, axis=(0, 2, 3))
    dice = 1.0 - (2.0 * intersect + SMOOTH) / (z_sum + y_sum + SMOOTH)
    return jnp.dot(dice, weight) / n_classes


def _reference(inputs, target, n_classes, weight=None, softmax=False):
    """Pure-JAX reference mirroring the PyTorch module."""
    if softmax:
        inputs = jax.nn.softmax(inputs, axis=1)
    if weight is None:
        weight = [1.0] * n_classes
    one_hot = (target[:, None, :, :] ==
               jnp.arange(n_classes)[None, :, None, None]).astype(jnp.float32)
    loss = 0.0
    for i in range(n_classes):
        score = inputs[:, i].astype(jnp.float32)
        tgt = one_hot[:, i]
        intersect = jnp.sum(score * tgt)
        y_sum = jnp.sum(tgt * tgt)
        z_sum = jnp.sum(score * score)
        dice = 1.0 - (2.0 * intersect + SMOOTH) / (z_sum + y_sum + SMOOTH)
        loss = loss + dice * weight[i]
    return loss / n_classes


if __name__ == "__main__":
    B, C, H, W = 2, 4, 16, 16
    key = jax.random.PRNGKey(0)
    k1, k2 = jax.random.split(key)

    inputs = jax.random.normal(k1, (B, C, H, W), dtype=jnp.float32)
    target = jax.random.randint(k2, (B, H, W), 0, C, dtype=jnp.int32)

    # default path (no softmax, unit weights)
    out = mutil_dice_loss(inputs, target, n_classes=C)
    out = jax.block_until_ready(out)
    ref = _reference(inputs, target, n_classes=C)
    assert jnp.allclose(out, ref, rtol=1e-5, atol=1e-6), (out, ref)

    # fused-softmax + per-class weights path
    w = [0.5, 1.0, 2.0, 1.5]
    out2 = mutil_dice_loss(inputs, target, n_classes=C, weight=w, softmax=True)
    out2 = jax.block_until_ready(out2)
    ref2 = _reference(inputs, target, n_classes=C, weight=w, softmax=True)
    assert jnp.allclose(out2, ref2, rtol=1e-5, atol=1e-6), (out2, ref2)

    print("KERNEL_OK")
</pallas_src>

<mosaic_0001>
module attributes {stable_mosaic.version = 11 : i64} {
  func.func @kernel(%arg0: i32, %arg1: i32, %arg2: memref<2x4x32x128xf32, #tpu.memory_space<vmem>>, %arg3: memref<2x32x128xi8, #tpu.memory_space<vmem>>, %arg4: memref<1x4x8x128xf32, #tpu.memory_space<vmem>>, %arg5: memref<1x4x8x128xf32, #tpu.memory_space<vmem>>, %arg6: memref<1x4x8x128xf32, #tpu.memory_space<vmem>>) attributes {dimension_semantics = [#tpu.dimension_semantics<parallel>, #tpu.dimension_semantics<arbitrary>], iteration_bounds = array<i64: 1, 1>, scalar_prefetch = 0 : i64, scratch_operands = 0 : i64, tpu.core_type = #tpu.core_type<tc>, window_params = [{transform_indices = @transform_0, window_bounds = array<i64: 2, 4, 32, 128>}, {transform_indices = @transform_1, window_bounds = array<i64: 2, 32, 128>}, {transform_indices = @transform_2, window_bounds = array<i64: 1, 4, 8, 128>}, {transform_indices = @transform_3, window_bounds = array<i64: 1, 4, 8, 128>}, {transform_indices = @transform_4, window_bounds = array<i64: 1, 4, 8, 128>}]} {
    %c0_i32 = arith.constant 0 : i32
    %0 = arith.cmpi eq, %arg1, %c0_i32 : i32
    %1 = arith.extui %0 : i1 to i32
    %c0_i32_0 = arith.constant 0 : i32
    %2 = arith.cmpi ne, %1, %c0_i32_0 : i32
    scf.if %2 {
      %cst_124 = arith.constant 0.000000e+00 : f32
      %133 = vector.broadcast %cst_124 : f32 to vector<1x4x8x128xf32>
      %c0_125 = arith.constant 0 : index
      %c0_126 = arith.constant 0 : index
      %c0_127 = arith.constant 0 : index
      %c0_128 = arith.constant 0 : index
      %134 = vector.load %arg4[%c0_125, %c0_126, %c0_127, %c0_128] : memref<1x4x8x128xf32, #tpu.memory_space<vmem>>, vector<1x4x8x128xf32>
      tpu.vector_store %arg4[%c0_125, %c0_126, %c0_127, %c0_128], %133 {strides = array<i32>} : memref<1x4x8x128xf32, #tpu.memory_space<vmem>>, vector<1x4x8x128xf32>,
      %cst_129 = arith.constant 0.000000e+00 : f32
      %135 = vector.broadcast %cst_129 : f32 to vector<1x4x8x128xf32>
      %c0_130 = arith.constant 0 : index
      %c0_131 = arith.constant 0 : index
      %c0_132 = arith.constant 0 : index
      %c0_133 = arith.constant 0 : index
      %136 = vector.load %arg5[%c0_130, %c0_131, %c0_132, %c0_133] : memref<1x4x8x128xf32, #tpu.memory_space<vmem>>, vector<1x4x8x128xf32>
      tpu.vector_store %arg5[%c0_130, %c0_131, %c0_132, %c0_133], %135 {strides = array<i32>} : memref<1x4x8x128xf32, #tpu.memory_space<vmem>>, vector<1x4x8x128xf32>,
      %cst_134 = arith.constant 0.000000e+00 : f32
      %137 = vector.broadcast %cst_134 : f32 to vector<1x4x8x128xf32>
      %c0_135 = arith.constant 0 : index
      %c0_136 = arith.constant 0 : index
      %c0_137 = arith.constant 0 : index
      %c0_138 = arith.constant 0 : index
      %138 = vector.load %arg6[%c0_135, %c0_136, %c0_137, %c0_138] : memref<1x4x8x128xf32, #tpu.memory_space<vmem>>, vector<1x4x8x128xf32>
      tpu.vector_store %arg6[%c0_135, %c0_136, %c0_137, %c0_138], %137 {strides = array<i32>} : memref<1x4x8x128xf32, #tpu.memory_space<vmem>>, vector<1x4x8x128xf32>,
    } else {
    }
    %c0 = arith.constant 0 : index
    %c0_1 = arith.constant 0 : index
    %c0_2 = arith.constant 0 : index
    %3 = vector.load %arg3[%c0, %c0_1, %c0_2] : memref<2x32x128xi8, #tpu.memory_space<vmem>>, vector<2x32x128xi8>
    %4 = arith.extsi %3 : vector<2x32x128xi8> to vector<2x32x128xi32>
    %c0_3 = arith.constant 0 : index
    %c0_4 = arith.constant 0 : index
    %c0_5 = arith.constant 0 : index
    %c0_6 = arith.constant 0 : index
    %5 = vector.load %arg2[%c0_3, %c0_4, %c0_5, %c0_6] : memref<2x4x32x128xf32, #tpu.memory_space<vmem>>, vector<2x1x32x128xf32>
    %6 = vector.shape_cast %5 : vector<2x1x32x128xf32> to vector<2x32x128xf32>
    %c0_i32_7 = arith.constant 0 : i32
    %7 = vector.broadcast %c0_i32_7 : i32 to vector<2x32x128xi32>
    %8 = arith.cmpi eq, %4, %7 : vector<2x32x128xi32>
    %9 = arith.extui %8 : vector<2x32x128xi1> to vector<2x32x128xi32>
    %10 = arith.sitofp %9 : vector<2x32x128xi32> to vector<2x32x128xf32>
    %11 = arith.mulf %6, %10 : vector<2x32x128xf32>
    %12 = vector.shape_cast %11 : vector<2x32x128xf32> to vector<8x8x128xf32>
    %cst = arith.constant dense<0.000000e+00> : vector<8x128xf32>
    %13 = vector.multi_reduction <add>, %12, %cst [0] : vector<8x8x128xf32> to vector<8x128xf32>
    %14 = vector.shape_cast %10 : vector<2x32x128xf32> to vector<8x8x128xf32>
    %cst_8 = arith.constant dense<0.000000e+00> : vector<8x128xf32>
    %15 = vector.multi_reduction <add>, %14, %cst_8 [0] : vector<8x8x128xf32> to vector<8x128xf32>
    %16 = arith.mulf %6, %6 : vector<2x32x128xf32>
    %17 = vector.shape_cast %16 : vector<2x32x128xf32> to vector<8x8x128xf32>
    %cst_9 = arith.constant dense<0.000000e+00> : vector<8x128xf32>
    %18 = vector.multi_reduction <add>, %17, %cst_9 [0] : vector<8x8x128xf32> to vector<8x128xf32>
    %c0_10 = arith.constant 0 : index
    %c0_11 = arith.constant 0 : index
    %c0_12 = arith.constant 0 : index
    %c0_13 = arith.constant 0 : index
    %19 = vector.load %arg4[%c0_10, %c0_11, %c0_12, %c0_13] : memref<1x4x8x128xf32, #tpu.memory_space<vmem>>, vector<1x1x8x128xf32>
    %20 = vector.shape_cast %19 : vector<1x1x8x128xf32> to vector<8x128xf32>
    %21 = arith.addf %20, %13 : vector<8x128xf32>
    %c0_14 = arith.constant 0 : index
    %c0_15 = arith.constant 0 : index
    %c0_16 = arith.constant 0 : index
    %c0_17 = arith.constant 0 : index
    %22 = vector.load %arg4[%c0_14, %c0_15, %c0_16, %c0_17] : memref<1x4x8x128xf32, #tpu.memory_space<vmem>>, vector<1x1x8x128xf32>
    %23 = vector.shape_cast %22 : vector<1x1x8x128xf32> to vector<8x128xf32>
    %24 = vector.shape_cast %21 : vector<8x128xf32> to vector<1x1x8x128xf32>
    tpu.vector_store %arg4[%c0_14, %c0_15, %c0_16, %c0_17], %24 {strides = array<i32>} : memref<1x4x8x128xf32, #tpu.memory_space<vmem>>, vector<1x1x8x128xf32>,
    %c0_18 = arith.constant 0 : index
    %c0_19 = arith.constant 0 : index
    %c0_20 = arith.constant 0 : index
    %c0_21 = arith.constant 0 : index
    %25 = vector.load %arg5[%c0_18, %c0_19, %c0_20, %c0_21] : memref<1x4x8x128xf32, #tpu.memory_space<vmem>>, vector<1x1x8x128xf32>
    %26 = vector.shape_cast %25 : vector<1x1x8x128xf32> to vector<8x128xf32>
    %27 = arith.addf %26, %15 : vector<8x128xf32>
    %c0_22 = arith.constant 0 : index
    %c0_23 = arith.constant 0 : index
    %c0_24 = arith.constant 0 : index
    %c0_25 = arith.constant 0 : index
    %28 = vector.load %arg5[%c0_22, %c0_23, %c0_24, %c0_25] : memref<1x4x8x128xf32, #tpu.memory_space<vmem>>, vector<1x1x8x128xf32>
    %29 = vector.shape_cast %28 : vector<1x1x8x128xf32> to vector<8x128xf32>
    %30 = vector.shape_cast %27 : vector<8x128xf32> to vector<1x1x8x128xf32>
    tpu.vector_store %arg5[%c0_22, %c0_23, %c0_24, %c0_25], %30 {strides = array<i32>} : memref<1x4x8x128xf32, #tpu.memory_space<vmem>>, vector<1x1x8x128xf32>,
    %c0_26 = arith.constant 0 : index
    %c0_27 = arith.constant 0 : index
    %c0_28 = arith.constant 0 : index
    %c0_29 = arith.constant 0 : index
    %31 = vector.load %arg6[%c0_26, %c0_27, %c0_28, %c0_29] : memref<1x4x8x128xf32, #tpu.memory_space<vmem>>, vector<1x1x8x128xf32>
    %32 = vector.shape_cast %31 : vector<1x1x8x128xf32> to vector<8x128xf32>
    %33 = arith.addf %32, %18 : vector<8x128xf32>
    %c0_30 = arith.constant 0 : index
    %c0_31 = arith.constant 0 : index
    %c0_32 = arith.constant 0 : index
    %c0_33 = arith.constant 0 : index
    %34 = vector.load %arg6[%c0_30, %c0_31, %c0_32, %c0_33] : memref<1x4x8x128xf32, #tpu.memory_space<vmem>>, vector<1x1x8x128xf32>
    %35 = vector.shape_cast %34 : vector<1x1x8x128xf32> to vector<8x128xf32>
    %36 = vector.shape_cast %33 : vector<8x128xf32> to vector<1x1x8x128xf32>
    tpu.vector_store %arg6[%c0_30, %c0_31, %c0_32, %c0_33], %36 {strides = array<i32>} : memref<1x4x8x128xf32, #tpu.memory_space<vmem>>, vector<1x1x8x128xf32>,
    %c0_34 = arith.constant 0 : index
    %c1 = arith.constant 1 : index
    %c0_35 = arith.constant 0 : index
    %c0_36 = arith.constant 0 : index
    %37 = vector.load %arg2[%c0_34, %c1, %c0_35, %c0_36] : memref<2x4x32x128xf32, #tpu.memory_space<vmem>>, vector<2x1x32x128xf32>
    %38 = vector.shape_cast %37 : vector<2x1x32x128xf32> to vector<2x32x128xf32>
    %c1_i32 = arith.constant 1 : i32
    %39 = vector.broadcast %c1_i32 : i32 to vector<2x32x128xi32>
    %40 = arith.cmpi eq, %4, %39 : vector<2x32x128xi32>
    %41 = arith.extui %40 : vector<2x32x128xi1> to vector<2x32x128xi32>
    %42 = arith.sitofp %41 : vector<2x32x128xi32> to vector<2x32x128xf32>
    %43 = arith.mulf %38, %42 : vector<2x32x128xf32>
    %44 = vector.shape_cast %43 : vector<2x32x128xf32> to vector<8x8x128xf32>
    %cst_37 = arith.constant dense<0.000000e+00> : vector<8x128xf32>
    %45 = vector.multi_reduction <add>, %44, %cst_37 [0] : vector<8x8x128xf32> to vector<8x128xf32>
    %46 = vector.shape_cast %42 : vector<2x32x128xf32> to vector<8x8x128xf32>
    %cst_38 = arith.constant dense<0.000000e+00> : vector<8x128xf32>
    %47 = vector.multi_reduction <add>, %46, %cst_38 [0] : vector<8x8x128xf32> to vector<8x128xf32>
    %48 = arith.mulf %38, %38 : vector<2x32x128xf32>
    %49 = vector.shape_cast %48 : vector<2x32x128xf32> to vector<8x8x128xf32>
    %cst_39 = arith.constant dense<0.000000e+00> : vector<8x128xf32>
    %50 = vector.multi_reduction <add>, %49, %cst_39 [0] : vector<8x8x128xf32> to vector<8x128xf32>
    %c0_40 = arith.constant 0 : index
    %c1_41 = arith.constant 1 : index
    %c0_42 = arith.constant 0 : index
    %c0_43 = arith.constant 0 : index
    %51 = vector.load %arg4[%c0_40, %c1_41, %c0_42, %c0_43] : memref<1x4x8x128xf32, #tpu.memory_space<vmem>>, vector<1x1x8x128xf32>
    %52 = vector.shape_cast %51 : vector<1x1x8x128xf32> to vector<8x128xf32>
    %53 = arith.addf %52, %45 : vector<8x128xf32>
    %c0_44 = arith.constant 0 : index
    %c1_45 = arith.constant 1 : index
    %c0_46 = arith.constant 0 : index
    %c0_47 = arith.constant 0 : index
    %54 = vector.load %arg4[%c0_44, %c1_45, %c0_46, %c0_47] : memref<1x4x8x128xf32, #tpu.memory_space<vmem>>, vector<1x1x8x128xf32>
    %55 = vector.shape_cast %54 : vector<1x1x8x128xf32> to vector<8x128xf32>
    %56 = vector.shape_cast %53 : vector<8x128xf32> to vector<1x1x8x128xf32>
    tpu.vector_store %arg4[%c0_44, %c1_45, %c0_46, %c0_47], %56 {strides = array<i32>} : memref<1x4x8x128xf32, #tpu.memory_space<vmem>>, vector<1x1x8x128xf32>,
    %c0_48 = arith.constant 0 : index
    %c1_49 = arith.constant 1 : index
    %c0_50 = arith.constant 0 : index
    %c0_51 = arith.constant 0 : index
    %57 = vector.load %arg5[%c0_48, %c1_49, %c0_50, %c0_51] : memref<1x4x8x128xf32, #tpu.memory_space<vmem>>, vector<1x1x8x128xf32>
    %58 = vector.shape_cast %57 : vector<1x1x8x128xf32> to vector<8x128xf32>
    %59 = arith.addf %58, %47 : vector<8x128xf32>
    %c0_52 = arith.constant 0 : index
    %c1_53 = arith.constant 1 : index
    %c0_54 = arith.constant 0 : index
    %c0_55 = arith.constant 0 : index
    %60 = vector.load %arg5[%c0_52, %c1_53, %c0_54, %c0_55] : memref<1x4x8x128xf32, #tpu.memory_space<vmem>>, vector<1x1x8x128xf32>
    %61 = vector.shape_cast %60 : vector<1x1x8x128xf32> to vector<8x128xf32>
    %62 = vector.shape_cast %59 : vector<8x128xf32> to vector<1x1x8x128xf32>
    tpu.vector_store %arg5[%c0_52, %c1_53, %c0_54, %c0_55], %62 {strides = array<i32>} : memref<1x4x8x128xf32, #tpu.memory_space<vmem>>, vector<1x1x8x128xf32>,
    %c0_56 = arith.constant 0 : index
    %c1_57 = arith.constant 1 : index
    %c0_58 = arith.constant 0 : index
    %c0_59 = arith.constant 0 : index
    %63 = vector.load %arg6[%c0_56, %c1_57, %c0_58, %c0_59] : memref<1x4x8x128xf32, #tpu.memory_space<vmem>>, vector<1x1x8x128xf32>
    %64 = vector.shape_cast %63 : vector<1x1x8x128xf32> to vector<8x128xf32>
    %65 = arith.addf %64, %50 : vector<8x128xf32>
    %c0_60 = arith.constant 0 : index
    %c1_61 = arith.constant 1 : index
    %c0_62 = arith.constant 0 : index
    %c0_63 = arith.constant 0 : index
    %66 = vector.load %arg6[%c0_60, %c1_61, %c0_62, %c0_63] : memref<1x4x8x128xf32, #tpu.memory_space<vmem>>, vector<1x1x8x128xf32>
    %67 = vector.shape_cast %66 : vector<1x1x8x128xf32> to vector<8x128xf32>
    %68 = vector.shape_cast %65 : vector<8x128xf32> to vector<1x1x8x128xf32>
    tpu.vector_store %arg6[%c0_60, %c1_61, %c0_62, %c0_63], %68 {strides = array<i32>} : memref<1x4x8x128xf32, #tpu.memory_space<vmem>>, vector<1x1x8x128xf32>,
    %c0_64 = arith.constant 0 : index
    %c2 = arith.constant 2 : index
    %c0_65 = arith.constant 0 : index
    %c0_66 = arith.constant 0 : index
    %69 = vector.load %arg2[%c0_64, %c2, %c0_65, %c0_66] : memref<2x4x32x128xf32, #tpu.memory_space<vmem>>, vector<2x1x32x128xf32>
    %70 = vector.shape_cast %69 : vector<2x1x32x128xf32> to vector<2x32x128xf32>
    %c2_i32 = arith.constant 2 : i32
    %71 = vector.broadcast %c2_i32 : i32 to vector<2x32x128xi32>
    %72 = arith.cmpi eq, %4, %71 : vector<2x32x128xi32>
    %73 = arith.extui %72 : vector<2x32x128xi1> to vector<2x32x128xi32>
    %74 = arith.sitofp %73 : vector<2x32x128xi32> to vector<2x32x128xf32>
    %75 = arith.mulf %70, %74 : vector<2x32x128xf32>
    %76 = vector.shape_cast %75 : vector<2x32x128xf32> to vector<8x8x128xf32>
    %cst_67 = arith.constant dense<0.000000e+00> : vector<8x128xf32>
    %77 = vector.multi_reduction <add>, %76, %cst_67 [0] : vector<8x8x128xf32> to vector<8x128xf32>
    %78 = vector.shape_cast %74 : vector<2x32x128xf32> to vector<8x8x128xf32>
    %cst_68 = arith.constant dense<0.000000e+00> : vector<8x128xf32>
    %79 = vector.multi_reduction <add>, %78, %cst_68 [0] : vector<8x8x128xf32> to vector<8x128xf32>
    %80 = arith.mulf %70, %70 : vector<2x32x128xf32>
    %81 = vector.shape_cast %80 : vector<2x32x128xf32> to vector<8x8x128xf32>
    %cst_69 = arith.constant dense<0.000000e+00> : vector<8x128xf32>
    %82 = vector.multi_reduction <add>, %81, %cst_69 [0] : vector<8x8x128xf32> to vector<8x128xf32>
    %c0_70 = arith.constant 0 : index
    %c2_71 = arith.constant 2 : index
    %c0_72 = arith.constant 0 : index
    %c0_73 = arith.constant 0 : index
    %83 = vector.load %arg4[%c0_70, %c2_71, %c0_72, %c0_73] : memref<1x4x8x128xf32, #tpu.memory_space<vmem>>, vector<1x1x8x128xf32>
    %84 = vector.shape_cast %83 : vector<1x1x8x128xf32> to vector<8x128xf32>
    %85 = arith.addf %84, %77 : vector<8x128xf32>
    %c0_74 = arith.constant 0 : index
    %c2_75 = arith.constant 2 : index
    %c0_76 = arith.constant 0 : index
    %c0_77 = arith.constant 0 : index
    %86 = vector.load %arg4[%c0_74, %c2_75, %c0_76, %c0_77] : memref<1x4x8x128xf32, #tpu.memory_space<vmem>>, vector<1x1x8x128xf32>
    %87 = vector.shape_cast %86 : vector<1x1x8x128xf32> to vector<8x128xf32>
    %88 = vector.shape_cast %85 : vector<8x128xf32> to vector<1x1x8x128xf32>
    tpu.vector_store %arg4[%c0_74, %c2_75, %c0_76, %c0_77], %88 {strides = array<i32>} : memref<1x4x8x128xf32, #tpu.memory_space<vmem>>, vector<1x1x8x128xf32>,
    %c0_78 = arith.constant 0 : index
    %c2_79 = arith.constant 2 : index
    %c0_80 = arith.constant 0 : index
    %c0_81 = arith.constant 0 : index
    %89 = vector.load %arg5[%c0_78, %c2_79, %c0_80, %c0_81] : memref<1x4x8x128xf32, #tpu.memory_space<vmem>>, vector<1x1x8x128xf32>
    %90 = vector.shape_cast %89 : vector<1x1x8x128xf32> to vector<8x128xf32>
    %91 = arith.addf %90, %79 : vector<8x128xf32>
    %c0_82 = arith.constant 0 : index
    %c2_83 = arith.constant 2 : index
    %c0_84 = arith.constant 0 : index
    %c0_85 = arith.constant 0 : index
    %92 = vector.load %arg5[%c0_82, %c2_83, %c0_84, %c0_85] : memref<1x4x8x128xf32, #tpu.memory_space<vmem>>, vector<1x1x8x128xf32>
    %93 = vector.shape_cast %92 : vector<1x1x8x128xf32> to vector<8x128xf32>
    %94 = vector.shape_cast %91 : vector<8x128xf32> to vector<1x1x8x128xf32>
    tpu.vector_store %arg5[%c0_82, %c2_83, %c0_84, %c0_85], %94 {strides = array<i32>} : memref<1x4x8x128xf32, #tpu.memory_space<vmem>>, vector<1x1x8x128xf32>,
    %c0_86 = arith.constant 0 : index
    %c2_87 = arith.constant 2 : index
    %c0_88 = arith.constant 0 : index
    %c0_89 = arith.constant 0 : index
    %95 = vector.load %arg6[%c0_86, %c2_87, %c0_88, %c0_89] : memref<1x4x8x128xf32, #tpu.memory_space<vmem>>, vector<1x1x8x128xf32>
    %96 = vector.shape_cast %95 : vector<1x1x8x128xf32> to vector<8x128xf32>
    %97 = arith.addf %96, %82 : vector<8x128xf32>
    %c0_90 = arith.constant 0 : index
    %c2_91 = arith.constant 2 : index
    %c0_92 = arith.constant 0 : index
    %c0_93 = arith.constant 0 : index
    %98 = vector.load %arg6[%c0_90, %c2_91, %c0_92, %c0_93] : memref<1x4x8x128xf32, #tpu.memory_space<vmem>>, vector<1x1x8x128xf32>
    %99 = vector.shape_cast %98 : vector<1x1x8x128xf32> to vector<8x128xf32>
    %100 = vector.shape_cast %97 : vector<8x128xf32> to vector<1x1x8x128xf32>
    tpu.vector_store %arg6[%c0_90, %c2_91, %c0_92, %c0_93], %100 {strides = array<i32>} : memref<1x4x8x128xf32, #tpu.memory_space<vmem>>, vector<1x1x8x128xf32>,
    %c0_94 = arith.constant 0 : index
    %c3 = arith.constant 3 : index
    %c0_95 = arith.constant 0 : index
    %c0_96 = arith.constant 0 : index
    %101 = vector.load %arg2[%c0_94, %c3, %c0_95, %c0_96] : memref<2x4x32x128xf32, #tpu.memory_space<vmem>>, vector<2x1x32x128xf32>
    %102 = vector.shape_cast %101 : vector<2x1x32x128xf32> to vector<2x32x128xf32>
    %c3_i32 = arith.constant 3 : i32
    %103 = vector.broadcast %c3_i32 : i32 to vector<2x32x128xi32>
    %104 = arith.cmpi eq, %4, %103 : vector<2x32x128xi32>
    %105 = arith.extui %104 : vector<2x32x128xi1> to vector<2x32x128xi32>
    %106 = arith.sitofp %105 : vector<2x32x128xi32> to vector<2x32x128xf32>
    %107 = arith.mulf %102, %106 : vector<2x32x128xf32>
    %108 = vector.shape_cast %107 : vector<2x32x128xf32> to vector<8x8x128xf32>
    %cst_97 = arith.constant dense<0.000000e+00> : vector<8x128xf32>
    %109 = vector.multi_reduction <add>, %108, %cst_97 [0] : vector<8x8x128xf32> to vector<8x128xf32>
    %110 = vector.shape_cast %106 : vector<2x32x128xf32> to vector<8x8x128xf32>
    %cst_98 = arith.constant dense<0.000000e+00> : vector<8x128xf32>
    %111 = vector.multi_reduction <add>, %110, %cst_98 [0] : vector<8x8x128xf32> to vector<8x128xf32>
    %112 = arith.mulf %102, %102 : vector<2x32x128xf32>
    %113 = vector.shape_cast %112 : vector<2x32x128xf32> to vector<8x8x128xf32>
    %cst_99 = arith.constant dense<0.000000e+00> : vector<8x128xf32>
    %114 = vector.multi_reduction <add>, %113, %cst_99 [0] : vector<8x8x128xf32> to vector<8x128xf32>
    %c0_100 = arith.constant 0 : index
    %c3_101 = arith.constant 3 : index
    %c0_102 = arith.constant 0 : index
    %c0_103 = arith.constant 0 : index
    %115 = vector.load %arg4[%c0_100, %c3_101, %c0_102, %c0_103] : memref<1x4x8x128xf32, #tpu.memory_space<vmem>>, vector<1x1x8x128xf32>
    %116 = vector.shape_cast %115 : vector<1x1x8x128xf32> to vector<8x128xf32>
    %117 = arith.addf %116, %109 : vector<8x128xf32>
    %c0_104 = arith.constant 0 : index
    %c3_105 = arith.constant 3 : index
    %c0_106 = arith.constant 0 : index
    %c0_107 = arith.constant 0 : index
    %118 = vector.load %arg4[%c0_104, %c3_105, %c0_106, %c0_107] : memref<1x4x8x128xf32, #tpu.memory_space<vmem>>, vector<1x1x8x128xf32>
    %119 = vector.shape_cast %118 : vector<1x1x8x128xf32> to vector<8x128xf32>
    %120 = vector.shape_cast %117 : vector<8x128xf32> to vector<1x1x8x128xf32>
    tpu.vector_store %arg4[%c0_104, %c3_105, %c0_106, %c0_107], %120 {strides = array<i32>} : memref<1x4x8x128xf32, #tpu.memory_space<vmem>>, vector<1x1x8x128xf32>,
    %c0_108 = arith.constant 0 : index
    %c3_109 = arith.constant 3 : index
    %c0_110 = arith.constant 0 : index
    %c0_111 = arith.constant 0 : index
    %121 = vector.load %arg5[%c0_108, %c3_109, %c0_110, %c0_111] : memref<1x4x8x128xf32, #tpu.memory_space<vmem>>, vector<1x1x8x128xf32>
    %122 = vector.shape_cast %121 : vector<1x1x8x128xf32> to vector<8x128xf32>
    %123 = arith.addf %122, %111 : vector<8x128xf32>
    %c0_112 = arith.constant 0 : index
    %c3_113 = arith.constant 3 : index
    %c0_114 = arith.constant 0 : index
    %c0_115 = arith.constant 0 : index
    %124 = vector.load %arg5[%c0_112, %c3_113, %c0_114, %c0_115] : memref<1x4x8x128xf32, #tpu.memory_space<vmem>>, vector<1x1x8x128xf32>
    %125 = vector.shape_cast %124 : vector<1x1x8x128xf32> to vector<8x128xf32>
    %126 = vector.shape_cast %123 : vector<8x128xf32> to vector<1x1x8x128xf32>
    tpu.vector_store %arg5[%c0_112, %c3_113, %c0_114, %c0_115], %126 {strides = array<i32>} : memref<1x4x8x128xf32, #tpu.memory_space<vmem>>, vector<1x1x8x128xf32>,
    %c0_116 = arith.constant 0 : index
    %c3_117 = arith.constant 3 : index
    %c0_118 = arith.constant 0 : index
    %c0_119 = arith.constant 0 : index
    %127 = vector.load %arg6[%c0_116, %c3_117, %c0_118, %c0_119] : memref<1x4x8x128xf32, #tpu.memory_space<vmem>>, vector<1x1x8x128xf32>
    %128 = vector.shape_cast %127 : vector<1x1x8x128xf32> to vector<8x128xf32>
    %129 = arith.addf %128, %114 : vector<8x128xf32>
    %c0_120 = arith.constant 0 : index
    %c3_121 = arith.constant 3 : index
    %c0_122 = arith.constant 0 : index
    %c0_123 = arith.constant 0 : index
    %130 = vector.load %arg6[%c0_120, %c3_121, %c0_122, %c0_123] : memref<1x4x8x128xf32, #tpu.memory_space<vmem>>, vector<1x1x8x128xf32>
    %131 = vector.shape_cast %130 : vector<1x1x8x128xf32> to vector<8x128xf32>
    %132 = vector.shape_cast %129 : vector<8x128xf32> to vector<1x1x8x128xf32>
    tpu.vector_store %arg6[%c0_120, %c3_121, %c0_122, %c0_123], %132 {strides = array<i32>} : memref<1x4x8x128xf32, #tpu.memory_space<vmem>>, vector<1x1x8x128xf32>,
    return
  }
  func.func @transform_0(%arg0: i32, %arg1: i32) -> (i32, i32, i32, i32) {
    %c1_i32 = arith.constant 1 : i32
    %0 = arith.muli %arg0, %c1_i32 : i32
    %1 = arith.addi %0, %arg1 : i32
    %c0_i32 = arith.constant 0 : i32
    %c0_i32_0 = arith.constant 0 : i32
    %c0_i32_1 = arith.constant 0 : i32
    %c0_i32_2 = arith.constant 0 : i32
    return %c0_i32, %c0_i32_0, %1, %c0_i32_1 : i32, i32, i32, i32
  }
  func.func @transform_1(%arg0: i32, %arg1: i32) -> (i32, i32, i32) {
    %c1_i32 = arith.constant 1 : i32
    %0 = arith.muli %arg0, %c1_i32 : i32
    %1 = arith.addi %0, %arg1 : i32
    %c0_i32 = arith.constant 0 : i32
    %c0_i32_0 = arith.constant 0 : i32
    %c0_i32_1 = arith.constant 0 : i32
    return %c0_i32, %1, %c0_i32_0 : i32, i32, i32
  }
  func.func @transform_2(%arg0: i32, %arg1: i32) -> (i32, i32, i32, i32) {
    %c0_i32 = arith.constant 0 : i32
    %c0_i32_0 = arith.constant 0 : i32
    %c0_i32_1 = arith.constant 0 : i32
    %c0_i32_2 = arith.constant 0 : i32
    return %arg0, %c0_i32, %c0_i32_0, %c0_i32_1 : i32, i32, i32, i32
  }
  func.func @transform_3(%arg0: i32, %arg1: i32) -> (i32, i32, i32, i32) {
    %c0_i32 = arith.constant 0 : i32
    %c0_i32_0 = arith.constant 0 : i32
    %c0_i32_1 = arith.constant 0 : i32
    %c0_i32_2 = arith.constant 0 : i32
    return %arg0, %c0_i32, %c0_i32_0, %c0_i32_1 : i32, i32, i32, i32
  }
  func.func @transform_4(%arg0: i32, %arg1: i32) -> (i32, i32, i32, i32) {
    %c0_i32 = arith.constant 0 : i32
    %c0_i32_0 = arith.constant 0 : i32
    %c0_i32_1 = arith.constant 0 : i32
    %c0_i32_2 = arith.constant 0 : i32
    return %arg0, %c0_i32, %c0_i32_0, %c0_i32_1 : i32, i32, i32, i32
  }
}

</mosaic_0001>

<llo_original>
// kernel: tpu_custom_call.1
$region0: #{tpu_custom_call.1}
  #allocation0 [shape = 'u32[]', space=smem, size = 0x4, offset = 0x4, fixed_abs, tag = 'smem constant byte address 0x4 - core index']
  #allocation1 [shape = 'u32[144,128]{1,0:T(1,128)}', space=vmem, size = 0x12000, scoped, tag = 'internal scratch']
  %s0 = inlined_call_operand.hbm [shape: f32[2,4,32,128], index: 0, kind: input, shape index: {}]
  %s1 = inlined_call_operand.hbm [shape: s8[2,32,128], index: 1, kind: input, shape index: {}]
  %s2 = inlined_call_operand.hbm [shape: f32[1,4,8,128], index: 2, kind: output, shape index: {0}]
  %s3 = inlined_call_operand.hbm [shape: f32[1,4,8,128], index: 3, kind: output, shape index: {1}]
  %s4 = inlined_call_operand.hbm [shape: f32[1,4,8,128], index: 4, kind: output, shape index: {2}]
  %5 = xla_tuple %s2, %s3, %s4
  %s6 = sld [smem:[#allocation0]]
  $region46: #{tpu_custom_call.1} parent=0
    _
  %s8 = ssub.s32 1, %s6
  %s9 = scalar_select 0, %s8, %s6
  $region1: #{tpu_custom_call.1} parent=0
    #allocation2 [shape = 'u8[131072]{0}', space=vmem, size = 0x20000, scoped, tag = 'input window, operand 0, single buffered']
    #allocation3 [shape = 's32[1]{0}', space=sflag, size = 0x4, scoped, tag = 'scoped memory for tpu_custom_call.1']
    #allocation4 [shape = 's32[1]{0}', space=sflag, size = 0x4, scoped, tag = 'scoped memory for tpu_custom_call.1']
    #allocation5 [shape = 'u8[8192]{0}', space=vmem, size = 0x2000, scoped, tag = 'input window, operand 1, single buffered']
    #allocation6 [shape = 's32[1]{0}', space=sflag, size = 0x4, scoped, tag = 'scoped memory for tpu_custom_call.1']
    #allocation7 [shape = 'u8[16384]{0}', space=vmem, size = 0x4000, scoped, tag = 'output window, operand 0, single buffered']
    #allocation8 [shape = 'u8[16384]{0}', space=vmem, size = 0x4000, scoped, tag = 'output window, operand 1, single buffered']
    #allocation9 [shape = 's32[1]{0}', space=sflag, size = 0x4, scoped, tag = 'scoped memory for tpu_custom_call.1']
    #allocation10 [shape = 'u8[16384]{0}', space=vmem, size = 0x4000, scoped, tag = 'output window, operand 2, single buffered']
    %10 = vsyncpa [#allocation3], 0
    %11 = vsyncpa [#allocation6], 0
    %12 = vsyncpa [#allocation4], 0
    %13 = vsyncpa [#allocation9], 0
    // Predicated region
    $region2: #{tpu_custom_call.1} parent=1 // pred_check
      _
    $region3: #{tpu_custom_call.1} parent=1 // pred_check_branch
      %15 = sbr.rel (0) target = $region5
    $region4: #{tpu_custom_call.1} parent=1 // pred_region
      %s16 = sadd.s32 0, 0
      %s17 = smul.u32 4, %s16
      %s19 = ssub.s32 4096, 4096
      %20 = vsyncadd [#allocation3], %s19
      %s21 = smul.addr %s17, 128
      %s22 = scalar_lea.hbm %s0, %s21
      %s23 = sshll.u32 [#allocation2], 4
      %s24 = int_to_ptr.vmem [resolvable:$true] %s23
      %29 = dma.hbm_to_vmem [thread:$0]  %s22, 4096, %s24, [#allocation3], 128, 128, 8
    $region5: #{tpu_custom_call.1} parent=1 // pred_fallthru
      _
    // Predicated region
    $region6: #{tpu_custom_call.1} parent=1 // pred_check
      _
    $region7: #{tpu_custom_call.1} parent=1 // pred_check_branch
      %31 = sbr.rel (0) target = $region9
    $region8: #{tpu_custom_call.1} parent=1 // pred_region
      %s32 = sadd.s32 0, 0
      %s34 = ssub.s32 256, 256
      %35 = vsyncadd [#allocation6], %s34
      %s36 = smul.addr %s32, 128
      %s37 = scalar_lea.hbm %s1, %s36
      %s38 = sshll.u32 [#allocation5], 4
      %s39 = int_to_ptr.vmem [resolvable:$true] %s38
      %44 = dma.hbm_to_vmem [thread:$0]  %s37, 256, %s39, [#allocation6], 128, 128, 8
    $region9: #{tpu_custom_call.1} parent=1 // pred_fallthru
      _
    // Predicated region
    $region10: #{tpu_custom_call.1} parent=1 // pred_check
      _
    $region11: #{tpu_custom_call.1} parent=1 // pred_check_branch
      %46 = sbr.rel (0) target = $region13
    $region12: #{tpu_custom_call.1} parent=1 // pred_region
      %47 = dma.done [#allocation3], 4096
    $region13: #{tpu_custom_call.1} parent=1 // pred_fallthru
      _
    // Predicated region
    $region14: #{tpu_custom_call.1} parent=1 // pred_check
      _
    $region15: #{tpu_custom_call.1} parent=1 // pred_check_branch
      %49 = sbr.rel (0) target = $region17
    $region16: #{tpu_custom_call.1} parent=1 // pred_region
      %50 = dma.done [#allocation6], 256
    $region17: #{tpu_custom_call.1} parent=1 // pred_fallthru
      _
    %s51 = sadd.s32 0, 0
    %s52 = smul.u32 4, %s51
    %s53 = sadd.s32 0, 0
    %p54 = scmp.eq.s32.totalorder 0, 0
    // Predicated region
    $region18: #{tpu_custom_call.1} parent=1 // pred_check
      %p55 = pneg %p54
    $region19: #{tpu_custom_call.1} parent=1 // pred_check_branch
      %57 = sbr.rel (%p55) target = $region21
    $region20: #{tpu_custom_call.1} parent=1 // pred_region
      %58 = vst [vmem:[#allocation7] sm:$0xff] 0.0
      %59 = vst [vmem:[#allocation7 + $0x8] sm:$0xff] 0.0
      %60 = vst [vmem:[#allocation7 + $0x10] sm:$0xff] 0.0
      %61 = vst [vmem:[#allocation7 + $0x18] sm:$0xff] 0.0
      %62 = vst [vmem:[#allocation8] sm:$0xff] 0.0
      %63 = vst [vmem:[#allocation8 + $0x8] sm:$0xff] 0.0
      %64 = vst [vmem:[#allocation8 + $0x10] sm:$0xff] 0.0
      %65 = vst [vmem:[#allocation8 + $0x18] sm:$0xff] 0.0
      %66 = vst [vmem:[#allocation10] sm:$0xff] 0.0
      %67 = vst [vmem:[#allocation10 + $0x8] sm:$0xff] 0.0
      %68 = vst [vmem:[#allocation10 + $0x10] sm:$0xff] 0.0
      %69 = vst [vmem:[#allocation10 + $0x18] sm:$0xff] 0.0
    $region21: #{tpu_custom_call.1} parent=1 // pred_fallthru
      _
    %v70 = vld [vmem:[#allocation5] sm:$0xff]
    %v71 = vld [vmem:[#allocation5 + $0x8] sm:$0xff]
    %v72 = vunpack.c.0.s8 %v70
    %v73 = vunpack.c.1.s8 %v70
    %v74 = vunpack.c.2.s8 %v70
    %v75 = vunpack.c.3.s8 %v70
    %v76 = vunpack.c.0.s8 %v71
    %v77 = vunpack.c.1.s8 %v71
    %v78 = vunpack.c.2.s8 %v71
    %v79 = vunpack.c.3.s8 %v71
    %v80 = vld [vmem:[#allocation2] sm:$0xff]
    %v81 = vld [vmem:[#allocation2 + $0x8] sm:$0xff]
    %v82 = vld [vmem:[#allocation2 + $0x10] sm:$0xff]
    %v83 = vld [vmem:[#allocation2 + $0x18] sm:$0xff]
    %v84 = vld [vmem:[#allocation2 + $0x80] sm:$0xff]
    %v85 = vld [vmem:[#allocation2 + $0x88] sm:$0xff]
    %v86 = vld [vmem:[#allocation2 + $0x90] sm:$0xff]
    %v87 = vld [vmem:[#allocation2 + $0x98] sm:$0xff]
    %vm88 = vcmp.eq.s32.totalorder %v72, 0
    %vm89 = vcmp.eq.s32.totalorder %v73, 0
    %vm90 = vcmp.eq.s32.totalorder %v74, 0
    %vm91 = vcmp.eq.s32.totalorder %v75, 0
    %vm92 = vcmp.eq.s32.totalorder %v76, 0
    %vm93 = vcmp.eq.s32.totalorder %v77, 0
    %vm94 = vcmp.eq.s32.totalorder %v78, 0
    %vm95 = vcmp.eq.s32.totalorder %v79, 0
    %v96 = vsel %vm88, 1, 0
    %v97 = vsel %vm89, 1, 0
    %v98 = vsel %vm90, 1, 0
    %v99 = vsel %vm91, 1, 0
    %v100 = vsel %vm92, 1, 0
    %v101 = vsel %vm93, 1, 0
    %v102 = vsel %vm94, 1, 0
    %v103 = vsel %vm95, 1, 0
    %v104 = vcvt.s32.f32 %v96
    %v105 = vcvt.s32.f32 %v97
    %v106 = vcvt.s32.f32 %v98
    %v107 = vcvt.s32.f32 %v99
    %v108 = vcvt.s32.f32 %v100
    %v109 = vcvt.s32.f32 %v101
    %v110 = vcvt.s32.f32 %v102
    %v111 = vcvt.s32.f32 %v103
    %v112 = vmul.f32 %v80, %v104
    %v113 = vmul.f32 %v81, %v105
    %v114 = vmul.f32 %v82, %v106
    %v115 = vmul.f32 %v83, %v107
    %v116 = vmul.f32 %v84, %v108
    %v117 = vmul.f32 %v85, %v109
    %v118 = vmul.f32 %v86, %v110
    %v119 = vmul.f32 %v87, %v111
    %v120 = vadd.f32 %v112, %v113
    %v121 = vadd.f32 %v120, %v114
    %v122 = vadd.f32 %v121, %v115
    %v123 = vadd.f32 %v122, %v116
    %v124 = vadd.f32 %v123, %v117
    %v125 = vadd.f32 %v124, %v118
    %v126 = vadd.f32 %v125, %v119
    %v127 = vadd.f32 %v104, %v105
    %v128 = vadd.f32 %v127, %v106
    %v129 = vadd.f32 %v128, %v107
    %v130 = vadd.f32 %v129, %v108
    %v131 = vadd.f32 %v130, %v109
    %v132 = vadd.f32 %v131, %v110
    %v133 = vadd.f32 %v132, %v111
    %v134 = vmul.f32 %v80, %v80
    %v135 = vmul.f32 %v81, %v81
    %v136 = vmul.f32 %v82, %v82
    %v137 = vmul.f32 %v83, %v83
    %v138 = vmul.f32 %v84, %v84
    %v139 = vmul.f32 %v85, %v85
    %v140 = vmul.f32 %v86, %v86
    %v141 = vmul.f32 %v87, %v87
    %v142 = vadd.f32 %v134, %v135
    %v143 = vadd.f32 %v142, %v136
    %v144 = vadd.f32 %v143, %v137
    %v145 = vadd.f32 %v144, %v138
    %v146 = vadd.f32 %v145, %v139
    %v147 = vadd.f32 %v146, %v140
    %v148 = vadd.f32 %v147, %v141
    %v149 = vld [vmem:[#allocation7] sm:$0xff]
    %v150 = vadd.f32 %v149, %v126
    %151 = vst [vmem:[#allocation7] sm:$0xff] %v150
    %v152 = vld [vmem:[#allocation8] sm:$0xff]
    %v153 = vadd.f32 %v152, %v133
    %154 = vst [vmem:[#allocation8] sm:$0xff] %v153
    %v155 = vld [vmem:[#allocation10] sm:$0xff]
    %v156 = vadd.f32 %v155, %v148
    %157 = vst [vmem:[#allocation10] sm:$0xff] %v156
    %s158 = scalar_lea.vmem [#allocation2], 32
    %v159 = vld [vmem:[%s158] sm:$0xff]
    %v160 = vld [vmem:[%s158 + $0x8] sm:$0xff]
    %v161 = vld [vmem:[%s158 + $0x10] sm:$0xff]
    %v162 = vld [vmem:[%s158 + $0x18] sm:$0xff]
    %v163 = vld [vmem:[%s158 + $0x80] sm:$0xff]
    %v164 = vld [vmem:[%s158 + $0x88] sm:$0xff]
    %v165 = vld [vmem:[%s158 + $0x90] sm:$0xff]
    %v166 = vld [vmem:[%s158 + $0x98] sm:$0xff]
    %vm167 = vcmp.eq.s32.totalorder %v72, 1
    %vm168 = vcmp.eq.s32.totalorder %v73, 1
    %vm169 = vcmp.eq.s32.totalorder %v74, 1
    %vm170 = vcmp.eq.s32.totalorder %v75, 1
    %vm171 = vcmp.eq.s32.totalorder %v76, 1
    %vm172 = vcmp.eq.s32.totalorder %v77, 1
    %vm173 = vcmp.eq.s32.totalorder %v78, 1
    %vm174 = vcmp.eq.s32.totalorder %v79, 1
    %v175 = vsel %vm167, 1, 0
    %v176 = vsel %vm168, 1, 0
    %v177 = vsel %vm169, 1, 0
    %v178 = vsel %vm170, 1, 0
    %v179 = vsel %vm171, 1, 0
    %v180 = vsel %vm172, 1, 0
    %v181 = vsel %vm173, 1, 0
    %v182 = vsel %vm174, 1, 0
    %v183 = vcvt.s32.f32 %v175
    %v184 = vcvt.s32.f32 %v176
    %v185 = vcvt.s32.f32 %v177
    %v186 = vcvt.s32.f32 %v178
    %v187 = vcvt.s32.f32 %v179
    %v188 = vcvt.s32.f32 %v180
    %v189 = vcvt.s32.f32 %v181
    %v190 = vcvt.s32.f32 %v182
    %v191 = vmul.f32 %v159, %v183
    %v192 = vmul.f32 %v160, %v184
    %v193 = vmul.f32 %v161, %v185
    %v194 = vmul.f32 %v162, %v186
    %v195 = vmul.f32 %v163, %v187
    %v196 = vmul.f32 %v164, %v188
    %v197 = vmul.f32 %v165, %v189
    %v198 = vmul.f32 %v166, %v190
    %v199 = vadd.f32 %v191, %v192
    %v200 = vadd.f32 %v199, %v193
    %v201 = vadd.f32 %v200, %v194
    %v202 = vadd.f32 %v201, %v195
    %v203 = vadd.f32 %v202, %v196
    %v204 = vadd.f32 %v203, %v197
    %v205 = vadd.f32 %v204, %v198
    %v206 = vadd.f32 %v183, %v184
    %v207 = vadd.f32 %v206, %v185
    %v208 = vadd.f32 %v207, %v186
    %v209 = vadd.f32 %v208, %v187
    %v210 = vadd.f32 %v209, %v188
    %v211 = vadd.f32 %v210, %v189
    %v212 = vadd.f32 %v211, %v190
    %v213 = vmul.f32 %v159, %v159
    %v214 = vmul.f32 %v160, %v160
    %v215 = vmul.f32 %v161, %v161
    %v216 = vmul.f32 %v162, %v162
    %v217 = vmul.f32 %v163, %v163
    %v218 = vmul.f32 %v164, %v164
    %v219 = vmul.f32 %v165, %v165
    %v220 = vmul.f32 %v166, %v166
    %v221 = vadd.f32 %v213, %v214
    %v222 = vadd.f32 %v221, %v215
    %v223 = vadd.f32 %v222, %v216
    %v224 = vadd.f32 %v223, %v217
    %v225 = vadd.f32 %v224, %v218
    %v226 = vadd.f32 %v225, %v219
    %v227 = vadd.f32 %v226, %v220
    %s228 = scalar_lea.vmem [#allocation7], 8
    %v229 = vld [vmem:[%s228] sm:$0xff]
    %v230 = vadd.f32 %v229, %v205
    %231 = vst [vmem:[%s228] sm:$0xff] %v230
    %s232 = scalar_lea.vmem [#allocation8], 8
    %v233 = vld [vmem:[%s232] sm:$0xff]
    %v234 = vadd.f32 %v233, %v212
    %235 = vst [vmem:[%s232] sm:$0xff] %v234
    %s236 = scalar_lea.vmem [#allocation10], 8
    %v237 = vld [vmem:[%s236] sm:$0xff]
    %v238 = vadd.f32 %v237, %v227
    %239 = vst [vmem:[%s236] sm:$0xff] %v238
    %s240 = scalar_lea.vmem [#allocation2], 64
    %v241 = vld [vmem:[%s240] sm:$0xff]
    %v242 = vld [vmem:[%s240 + $0x8] sm:$0xff]
    %v243 = vld [vmem:[%s240 + $0x10] sm:$0xff]
    %v244 = vld [vmem:[%s240 + $0x18] sm:$0xff]
    %v245 = vld [vmem:[%s240 + $0x80] sm:$0xff]
    %v246 = vld [vmem:[%s240 + $0x88] sm:$0xff]
    %v247 = vld [vmem:[%s240 + $0x90] sm:$0xff]
    %v248 = vld [vmem:[%s240 + $0x98] sm:$0xff]
    %vm249 = vcmp.eq.s32.totalorder %v72, 2
    %vm250 = vcmp.eq.s32.totalorder %v73, 2
    %vm251 = vcmp.eq.s32.totalorder %v74, 2
    %vm252 = vcmp.eq.s32.totalorder %v75, 2
    %vm253 = vcmp.eq.s32.totalorder %v76, 2
    %vm254 = vcmp.eq.s32.totalorder %v77, 2
    %vm255 = vcmp.eq.s32.totalorder %v78, 2
    %vm256 = vcmp.eq.s32.totalorder %v79, 2
    %v257 = vsel %vm249, 1, 0
    %v258 = vsel %vm250, 1, 0
    %v259 = vsel %vm251, 1, 0
    %v260 = vsel %vm252, 1, 0
    %v261 = vsel %vm253, 1, 0
    %v262 = vsel %vm254, 1, 0
    %v263 = vsel %vm255, 1, 0
    %v264 = vsel %vm256, 1, 0
    %v265 = vcvt.s32.f32 %v257
    %v266 = vcvt.s32.f32 %v258
    %v267 = vcvt.s32.f32 %v259
    %v268 = vcvt.s32.f32 %v260
    %v269 = vcvt.s32.f32 %v261
    %v270 = vcvt.s32.f32 %v262
    %v271 = vcvt.s32.f32 %v263
    %v272 = vcvt.s32.f32 %v264
    %v273 = vmul.f32 %v241, %v265
    %v274 = vmul.f32 %v242, %v266
    %v275 = vmul.f32 %v243, %v267
    %v276 = vmul.f32 %v244, %v268
    %v277 = vmul.f32 %v245, %v269
    %v278 = vmul.f32 %v246, %v270
    %v279 = vmul.f32 %v247, %v271
    %v280 = vmul.f32 %v248, %v272
    %v281 = vadd.f32 %v273, %v274
    %v282 = vadd.f32 %v281, %v275
    %v283 = vadd.f32 %v282, %v276
    %v284 = vadd.f32 %v283, %v277
    %v285 = vadd.f32 %v284, %v278
    %v286 = vadd.f32 %v285, %v279
    %v287 = vadd.f32 %v286, %v280
    %v288 = vadd.f32 %v265, %v266
    %v289 = vadd.f32 %v288, %v267
    %v290 = vadd.f32 %v289, %v268
    %v291 = vadd.f32 %v290, %v269
    %v292 = vadd.f32 %v291, %v270
    %v293 = vadd.f32 %v292, %v271
    %v294 = vadd.f32 %v293, %v272
    %v295 = vmul.f32 %v241, %v241
    %v296 = vmul.f32 %v242, %v242
    %v297 = vmul.f32 %v243, %v243
    %v298 = vmul.f32 %v244, %v244
    %v299 = vmul.f32 %v245, %v245
    %v300 = vmul.f32 %v246, %v246
    %v301 = vmul.f32 %v247, %v247
    %v302 = vmul.f32 %v248, %v248
    %v303 = vadd.f32 %v295, %v296
    %v304 = vadd.f32 %v303, %v297
    %v305 = vadd.f32 %v304, %v298
    %v306 = vadd.f32 %v305, %v299
    %v307 = vadd.f32 %v306, %v300
    %v308 = vadd.f32 %v307, %v301
    %v309 = vadd.f32 %v308, %v302
    %s310 = scalar_lea.vmem [#allocation7], 16
    %v311 = vld [vmem:[%s310] sm:$0xff]
    %v312 = vadd.f32 %v311, %v287
    %313 = vst [vmem:[%s310] sm:$0xff] %v312
    %s314 = scalar_lea.vmem [#allocation8], 16
    %v315 = vld [vmem:[%s314] sm:$0xff]
    %v316 = vadd.f32 %v315, %v294
    %317 = vst [vmem:[%s314] sm:$0xff] %v316
    %s318 = scalar_lea.vmem [#allocation10], 16
    %v319 = vld [vmem:[%s318] sm:$0xff]
    %v320 = vadd.f32 %v319, %v309
    %321 = vst [vmem:[%s318] sm:$0xff] %v320
    %s322 = scalar_lea.vmem [#allocation2], 96
    %v323 = vld [vmem:[%s322] sm:$0xff]
    %v324 = vld [vmem:[%s322 + $0x8] sm:$0xff]
    %v325 = vld [vmem:[%s322 + $0x10] sm:$0xff]
    %v326 = vld [vmem:[%s322 + $0x18] sm:$0xff]
    %v327 = vld [vmem:[%s322 + $0x80] sm:$0xff]
    %v328 = vld [vmem:[%s322 + $0x88] sm:$0xff]
    %v329 = vld [vmem:[%s322 + $0x90] sm:$0xff]
    %v330 = vld [vmem:[%s322 + $0x98] sm:$0xff]
    %vm331 = vcmp.eq.s32.totalorder %v72, 3
    %vm332 = vcmp.eq.s32.totalorder %v73, 3
    %vm333 = vcmp.eq.s32.totalorder %v74, 3
    %vm334 = vcmp.eq.s32.totalorder %v75, 3
    %vm335 = vcmp.eq.s32.totalorder %v76, 3
    %vm336 = vcmp.eq.s32.totalorder %v77, 3
    %vm337 = vcmp.eq.s32.totalorder %v78, 3
    %vm338 = vcmp.eq.s32.totalorder %v79, 3
    %v339 = vsel %vm331, 1, 0
    %v340 = vsel %vm332, 1, 0
    %v341 = vsel %vm333, 1, 0
    %v342 = vsel %vm334, 1, 0
    %v343 = vsel %vm335, 1, 0
    %v344 = vsel %vm336, 1, 0
    %v345 = vsel %vm337, 1, 0
    %v346 = vsel %vm338, 1, 0
    %v347 = vcvt.s32.f32 %v339
    %v348 = vcvt.s32.f32 %v340
    %v349 = vcvt.s32.f32 %v341
    %v350 = vcvt.s32.f32 %v342
    %v351 = vcvt.s32.f32 %v343
    %v352 = vcvt.s32.f32 %v344
    %v353 = vcvt.s32.f32 %v345
    %v354 = vcvt.s32.f32 %v346
    %v355 = vmul.f32 %v323, %v347
    %v356 = vmul.f32 %v324, %v348
    %v357 = vmul.f32 %v325, %v349
    %v358 = vmul.f32 %v326, %v350
    %v359 = vmul.f32 %v327, %v351
    %v360 = vmul.f32 %v328, %v352
    %v361 = vmul.f32 %v329, %v353
    %v362 = vmul.f32 %v330, %v354
    %v363 = vadd.f32 %v355, %v356
    %v364 = vadd.f32 %v363, %v357
    %v365 = vadd.f32 %v364, %v358
    %v366 = vadd.f32 %v365, %v359
    %v367 = vadd.f32 %v366, %v360
    %v368 = vadd.f32 %v367, %v361
    %v369 = vadd.f32 %v368, %v362
    %v370 = vadd.f32 %v347, %v348
    %v371 = vadd.f32 %v370, %v349
    %v372 = vadd.f32 %v371, %v350
    %v373 = vadd.f32 %v372, %v351
    %v374 = vadd.f32 %v373, %v352
    %v375 = vadd.f32 %v374, %v353
    %v376 = vadd.f32 %v375, %v354
    %v377 = vmul.f32 %v323, %v323
    %v378 = vmul.f32 %v324, %v324
    %v379 = vmul.f32 %v325, %v325
    %v380 = vmul.f32 %v326, %v326
    %v381 = vmul.f32 %v327, %v327
    %v382 = vmul.f32 %v328, %v328
    %v383 = vmul.f32 %v329, %v329
    %v384 = vmul.f32 %v330, %v330
    %v385 = vadd.f32 %v377, %v378
    %v386 = vadd.f32 %v385, %v379
    %v387 = vadd.f32 %v386, %v380
    %v388 = vadd.f32 %v387, %v381
    %v389 = vadd.f32 %v388, %v382
    %v390 = vadd.f32 %v389, %v383
    %v391 = vadd.f32 %v390, %v384
    %s392 = scalar_lea.vmem [#allocation7], 24
    %v393 = vld [vmem:[%s392] sm:$0xff]
    %v394 = vadd.f32 %v393, %v369
    %395 = vst [vmem:[%s392] sm:$0xff] %v394
    %s396 = scalar_lea.vmem [#allocation8], 24
    %v397 = vld [vmem:[%s396] sm:$0xff]
    %v398 = vadd.f32 %v397, %v376
    %399 = vst [vmem:[%s396] sm:$0xff] %v398
    %s400 = scalar_lea.vmem [#allocation10], 24
    %v401 = vld [vmem:[%s400] sm:$0xff]
    %v402 = vadd.f32 %v401, %v391
    %403 = vst [vmem:[%s400] sm:$0xff] %v402
    // Predicated region
    $region22: #{tpu_custom_call.1} parent=1 // pred_check
      _
    $region23: #{tpu_custom_call.1} parent=1 // pred_check_branch
      %405 = sbr.rel (0) target = $region25
    $region24: #{tpu_custom_call.1} parent=1 // pred_region
      %s407 = ssub.s32 512, 512
      %408 = vsyncadd [#allocation4], %s407
      %s409 = sshll.u32 [#allocation7], 4
      %s410 = int_to_ptr.vmem [resolvable:$true] %s409
      %415 = dma.vmem_to_hbm [thread:$0]  %s410, 512, %s2, [#allocation4], 128, 128, 8
    $region25: #{tpu_custom_call.1} parent=1 // pred_fallthru
      _
    // Predicated region
    $region26: #{tpu_custom_call.1} parent=1 // pred_check
      _
    $region27: #{tpu_custom_call.1} parent=1 // pred_check_branch
      %417 = sbr.rel (0) target = $region29
    $region28: #{tpu_custom_call.1} parent=1 // pred_region
      %s419 = ssub.s32 512, 512
      %420 = vsyncadd [#allocation9], %s419
      %s421 = sshll.u32 [#allocation8], 4
      %s422 = int_to_ptr.vmem [resolvable:$true] %s421
      %427 = dma.vmem_to_hbm [thread:$0]  %s422, 512, %s3, [#allocation9], 128, 128, 8
    $region29: #{tpu_custom_call.1} parent=1 // pred_fallthru
      _
    // Predicated region
    $region30: #{tpu_custom_call.1} parent=1 // pred_check
      _
    $region31: #{tpu_custom_call.1} parent=1 // pred_check_branch
      %429 = sbr.rel (0) target = $region33
    $region32: #{tpu_custom_call.1} parent=1 // pred_region
      %s431 = ssub.s32 512, 512
      %432 = vsyncadd [#allocation9], %s431
      %s433 = sshll.u32 [#allocation10], 4
      %s434 = int_to_ptr.vmem [resolvable:$true] %s433
      %439 = dma.vmem_to_hbm [thread:$0]  %s434, 512, %s4, [#allocation9], 128, 128, 8
    $region33: #{tpu_custom_call.1} parent=1 // pred_fallthru
      _
    // Predicated region
    $region34: #{tpu_custom_call.1} parent=1 // pred_check
      _
    $region35: #{tpu_custom_call.1} parent=1 // pred_check_branch
      %441 = sbr.rel (0) target = $region37
    $region36: #{tpu_custom_call.1} parent=1 // pred_region
      %442 = dma.done [#allocation4], 512
    $region37: #{tpu_custom_call.1} parent=1 // pred_fallthru
      _
    // Predicated region
    $region38: #{tpu_custom_call.1} parent=1 // pred_check
      _
    $region39: #{tpu_custom_call.1} parent=1 // pred_check_branch
      %444 = sbr.rel (0) target = $region41
    $region40: #{tpu_custom_call.1} parent=1 // pred_region
      %445 = dma.done [#allocation9], 512
    $region41: #{tpu_custom_call.1} parent=1 // pred_fallthru
      _
    // Predicated region
    $region42: #{tpu_custom_call.1} parent=1 // pred_check
      _
    $region43: #{tpu_custom_call.1} parent=1 // pred_check_branch
      %447 = sbr.rel (0) target = $region45
    $region44: #{tpu_custom_call.1} parent=1 // pred_region
      %448 = dma.done [#allocation9], 512
    $region45: #{tpu_custom_call.1} parent=1 // pred_fallthru
      _
    %449 = vsyncpa [#allocation3], 1
    %450 = vsyncpa [#allocation6], 1
    %451 = vsyncpa [#allocation4], 1
    %452 = vsyncpa [#allocation9], 1

</llo_original>
